<compile_context>
chip_gen: v7x
topology: tpu7x:2x2x1
jax: 0.10.0
libtpu: 0.0.40
codegen_flags: <defaults>
</compile_context>

<pallas_src>
import functools
import math

import jax
import jax.numpy as jnp
from jax.experimental import pallas as pl
from jax.experimental.pallas import tpu as pltpu

_LANE = 128


def _roundup(n, m):
    return -(-n // m) * m


def _sublane_pack(itemsize):
    # sublanes per vreg row-group: f32 -> 8, bf16 -> 16, int8/fp8 -> 32
    return 8 * max(1, 4 // int(itemsize))


def _interp_matrix(in_size, out_size, align_corners, scale=None):
    """(out_size, in_size) 1-D bilinear interpolation matrix, PyTorch semantics."""
    idx = jnp.arange(out_size, dtype=jnp.float32)
    if align_corners:
        if out_size > 1:
            src = idx * ((in_size - 1) / (out_size - 1))
        else:
            src = jnp.zeros_like(idx)  # PyTorch: scale = 0 when output size <= 1
    else:
        # Modern PyTorch (scale_factor given, recompute_scale_factor=None) uses
        # 1/scale_factor as the source step; fall back to in/out otherwise.
        step = (1.0 / float(scale)) if scale is not None else (in_size / out_size)
        src = jnp.maximum((idx + 0.5) * step - 0.5, 0.0)  # negative coords clamp to 0
    x0 = jnp.clip(jnp.floor(src).astype(jnp.int32), 0, in_size - 1)
    x1 = jnp.clip(x0 + 1, 0, in_size - 1)
    w1 = src - x0.astype(jnp.float32)
    w0 = 1.0 - w1
    rows = jnp.arange(out_size)
    m = jnp.zeros((out_size, in_size), jnp.float32)
    m = m.at[rows, x0].add(w0)
    m = m.at[rows, x1].add(w1)
    return m


def _vmem_plan(bc, h, w, ho, wo, io_isz, comp_isz, chunk):
    """Pick channels-per-grid-step (TC) and a VMEM limit.

    Generation-aware (queries the chip's physical VMEM) and padding-aware
    (accounts for (sublane, 128) tile padding of every resident buffer).
    """
    try:
        vmem_cap = int(pltpu.get_tpu_info().vmem_capacity_bytes)
    except Exception:
        vmem_cap = 64 * 1024 * 1024  # conservative fallback: fits every generation
    try:
        kind = jax.devices()[0].device_kind.lower()
    except Exception:
        kind = ""
    # v7x: two TensorCores per chip, 64 MiB VMEM per core.
    multi_tc = ("v7" in kind) or (vmem_cap <= 64 * 1024 * 1024)
    target = int(vmem_cap) * 6 // 10  # ~60% of physical VMEM (review: 50-75%)

    io_sub = _sublane_pack(io_isz)
    comp_sub = _sublane_pack(comp_isz)
    w_p = _roundup(w, _LANE)
    wo_p = _roundup(wo, _LANE)
    h_lp = _roundup(h, _LANE)

    # Bytes that scale with the channel block (both pipeline tiles double-buffered).
    per_c = (2 * _roundup(h, io_sub) * w_p * io_isz   # input tile  (tc, H, W)
             + 2 * ho * wo_p * io_isz)                # output tile (tc*Ho, Wo)
    # Resident interp matrices + per-chunk in-kernel temporaries (tc-independent).
    fixed = (2 * _roundup(ho, comp_sub) * h_lp * comp_isz           # A_h blocks
             + 2 * _roundup(w, comp_sub) * wo_p * comp_isz          # A_w^T blocks
             + chunk * _roundup(ho, comp_sub) * h_lp * comp_isz     # chunk bcast of A_h
             + chunk * _roundup(h, comp_sub) * w_p * comp_isz       # chunk input cast
             + chunk * _roundup(ho, comp_sub) * w_p * (4 + comp_isz)  # f32 H-interp (+cast)
             + _roundup(chunk * ho, 8) * wo_p * (4 + io_isz)        # f32 result (+cast)
             + 2 * 1024 * 1024)                                     # compiler scratch slack
    budget = target - fixed
    cap = budget // per_c if budget > 0 else 0
    if multi_tc and bc >= 2 * chunk:
        # Keep >= 2 blocks so both v7x TensorCores get work under
        # dimension_semantics=("parallel",). Not applied on 1-TC v5e/v6e.
        cap = min(cap, -(-bc // 2))
    tc = min(max(cap, chunk), _roundup(bc, chunk))
    tc = max(chunk, (tc // chunk) * chunk)  # multiple of the in-kernel chunk size
    return int(tc), int(target), bool(multi_tc)


def _make_kernel(chunk, n_chunks, comp_dtype):
    def kernel(ah_ref, awt_ref, x_ref, o_ref):
        # ah_ref : (Ho, H)      H-direction interpolation matrix (resident)
        # awt_ref: (W, Wo)      W-direction interpolation matrix, transposed (resident)
        # x_ref  : (TC, H, W)   TC channel slices of the input
        # o_ref  : (TC*Ho, Wo)  the corresponding TC output slices, row-stacked
        ho, h = ah_ref.shape
        w, wo = awt_ref.shape
        awt = awt_ref[...]
        # Chunk-sized (G, not TC-sized) broadcast of A_h, hoisted out of the loop.
        ah_c = jnp.broadcast_to(ah_ref[...], (chunk, ho, h))

        def chunk_body(i):
            xg = x_ref[pl.ds(i * chunk, chunk)].astype(comp_dtype)      # (G, H, W)
            # H-interp, batched over the G chunk channels (MXU, f32 accumulation).
            tmp = jnp.einsum("goh,ghw->gow", ah_c, xg,
                             preferred_element_type=jnp.float32)        # (G, Ho, W)
            # W-interp as one (G*Ho, W) @ (W, Wo) matmul, stored straight into
            # the 2-D output slab (no in-kernel transpose).
            tmp = tmp.reshape(chunk * ho, w).astype(comp_dtype)
            outg = jnp.dot(tmp, awt, preferred_element_type=jnp.float32)
            o_ref[pl.ds(i * (chunk * ho), chunk * ho), :] = outg.astype(o_ref.dtype)

        pl.loop(0, n_chunks, unroll=(n_chunks <= 8))(chunk_body)

    return kernel


@functools.partial(jax.jit, static_argnames=("scale_factor", "mode", "align_corners"))
def interpolate(x, *, scale_factor=2.0, mode="bilinear", align_corners=False):
    """Pallas equivalent of Interpolate.forward. x is NCHW."""
    if mode != "bilinear":
        # TODO(synk): only bilinear (the mode used by DPT/ZeroPlane heads) is implemented.
        raise NotImplementedError(f"mode={mode}")

    B, C, H, W = x.shape
    if isinstance(scale_factor, tuple):
        sf_h, sf_w = scale_factor
    else:
        sf_h = sf_w = scale_factor
    # PyTorch output-size rule (double-precision floor).
    Ho = int(math.floor(H * float(sf_h)))
    Wo = int(math.floor(W * float(sf_w)))

    # bf16 inputs take the native bf16 MXU path; everything else computes f32.
    comp_dtype = jnp.bfloat16 if x.dtype == jnp.bfloat16 else jnp.float32
    comp_isz = jnp.dtype(comp_dtype).itemsize
    io_isz = x.dtype.itemsize

    # TODO(synk): for very large H/W (v5e especially) switch to the banded
    # 2-tap VPU formulation instead of dense A matrices.
    a_h = _interp_matrix(H, Ho, align_corners, sf_h).astype(comp_dtype)      # (Ho, H)
    a_w_t = _interp_matrix(W, Wo, align_corners, sf_w).T.astype(comp_dtype)  # (W, Wo)

    bc = B * C
    chunk = _sublane_pack(io_isz)  # dtype-aware sublane alignment: 8 f32 / 16 bf16
    tc, vmem_limit, multi_tc = _vmem_plan(bc, H, W, Ho, Wo, io_isz, comp_isz, chunk)
    nblk = -(-bc // tc)
    if multi_tc and nblk > 1 and nblk % 2:
        # Rebalance to an even block count so both v7x TensorCores finish together.
        tc_alt = max(chunk, _roundup(-(-bc // (nblk + 1)), chunk))
        if -(-bc // tc_alt) % 2 == 0:
            tc = tc_alt
            nblk = -(-bc // tc)
    bcp = nblk * tc
    n_chunks = tc // chunk

    x_flat = x.reshape(bc, H, W)
    if bcp != bc:
        # Padded channels are computed and sliced off: wasted bandwidth only.
        x_flat = jnp.pad(x_flat, ((0, bcp - bc), (0, 0), (0, 0)))

    flops = 2 * bcp * (Ho * H * W + Ho * W * Wo)
    bytes_accessed = bcp * (H * W * io_isz + Ho * Wo * io_isz)

    # TODO(synk): when Wo < 128 the final store is lane-masked; a lane-dense
    # repacking would need an extra HBM-level transpose in the wrapper, which
    # costs more than it saves (realistic DPT shapes have Wo >= 128).
    # TODO(synk): if a trace shows exposed input DMA, add
    # pipeline_mode=pl.Buffered(3) to the x_flat BlockSpec.
    out_flat = pl.pallas_call(
        _make_kernel(chunk, n_chunks, comp_dtype),
        out_shape=jax.ShapeDtypeStruct((bcp * Ho, Wo), x.dtype),
        grid=(nblk,),
        in_specs=[
            pl.BlockSpec((Ho, H), lambda i: (0, 0)),        # A_h   (resident)
            pl.BlockSpec((W, Wo), lambda i: (0, 0)),        # A_w^T (resident)
            pl.BlockSpec((tc, H, W), lambda i: (i, 0, 0)),  # channel block
        ],
        out_specs=pl.BlockSpec((tc * Ho, Wo), lambda i: (i, 0)),
        compiler_params=pltpu.CompilerParams(
            dimension_semantics=("parallel",),
            vmem_limit_bytes=int(vmem_limit),
        ),
        cost_estimate=pl.CostEstimate(flops=int(flops), transcendentals=0,
                                      bytes_accessed=int(bytes_accessed)),
    )(a_h, a_w_t, x_flat)

    return out_flat.reshape(bcp, Ho, Wo)[:bc].reshape(B, C, Ho, Wo)


def _reference_interpolate(x, scale_factor, align_corners):
    """Pure-JAX reference (same math, no Pallas) for a sanity check."""
    B, C, H, W = x.shape
    Ho = int(math.floor(H * float(scale_factor)))
    Wo = int(math.floor(W * float(scale_factor)))
    a_h = _interp_matrix(H, Ho, align_corners, scale_factor)
    a_w = _interp_matrix(W, Wo, align_corners, scale_factor)
    return jnp.einsum("oh,bchw,pw->bcop", a_h, x.astype(jnp.float32), a_w).astype(x.dtype)


if __name__ == "__main__":
    key = jax.random.PRNGKey(0)
    B, C, H, W = 2, 4, 16, 16
    x = jax.random.normal(key, (B, C, H, W), dtype=jnp.float32)

    # DPT uses Interpolate(scale_factor=2, mode="bilinear", align_corners=True).
    y = interpolate(x, scale_factor=2.0, mode="bilinear", align_corners=True)
    jax.block_until_ready(y)
    assert y.shape == (B, C, 2 * H, 2 * W), y.shape
    assert jnp.allclose(y, _reference_interpolate(x, 2.0, True), atol=1e-4, rtol=1e-4)

    # align_corners=False (module default).
    y2 = interpolate(x, scale_factor=2.0, mode="bilinear", align_corners=False)
    jax.block_until_ready(y2)
    assert jnp.allclose(y2, _reference_interpolate(x, 2.0, False), atol=1e-4, rtol=1e-4)

    # Non-integer scale factor (exercises the 1/scale_factor coordinate path).
    y3 = interpolate(x, scale_factor=1.5, mode="bilinear", align_corners=False)
    jax.block_until_ready(y3)
    assert y3.shape == (B, C, 24, 24), y3.shape
    assert jnp.allclose(y3, _reference_interpolate(x, 1.5, False), atol=1e-4, rtol=1e-4)

    # bf16 path (native MXU dtype; H-interp intermediate rounded to bf16).
    xb = x.astype(jnp.bfloat16)
    y4 = interpolate(xb, scale_factor=2.0, mode="bilinear", align_corners=True)
    jax.block_until_ready(y4)
    assert jnp.allclose(y4.astype(jnp.float32), _reference_interpolate(x, 2.0, True),
                        atol=1e-1, rtol=1e-1)

    # Odd channel count -> exercises the channel-block padding path.
    x_odd = jax.random.normal(jax.random.PRNGKey(1), (1, 5, 8, 8), dtype=jnp.float32)
    y5 = interpolate(x_odd, scale_factor=2.0, mode="bilinear", align_corners=True)
    jax.block_until_ready(y5)
    assert y5.shape == (1, 5, 16, 16), y5.shape
    assert jnp.allclose(y5, _reference_interpolate(x_odd, 2.0, True), atol=1e-4, rtol=1e-4)

    print("KERNEL_OK")
</pallas_src>

<mosaic_0001>
module attributes {stable_mosaic.version = 11 : i64} {
  func.func private @main(%arg0: i32) attributes {dimension_semantics = [#tpu.dimension_semantics<core_parallel>], iteration_bounds = array<i64: 2>, tpu.core_type = #tpu.core_type<sc_scalar_subcore>, window_params = []} {
    return
  }
}

module attributes {stable_mosaic.version = 11 : i64} {
  func.func private @main(%arg0: i32) attributes {dimension_semantics = [#tpu.dimension_semantics<core_parallel>], iteration_bounds = array<i64: 2>, tpu.core_type = #tpu.core_type<sc_scalar_subcore>, window_params = []} {
    return
  }
}

module attributes {stable_mosaic.version = 11 : i64} {
  func.func @kernel(%arg0: i32, %arg1: memref<32x16xf32, #tpu.memory_space<vmem>>, %arg2: memref<16x32xf32, #tpu.memory_space<vmem>>, %arg3: memref<8x16x16xf32, #tpu.memory_space<vmem>>, %arg4: memref<256x32xf32, #tpu.memory_space<vmem>>) attributes {dimension_semantics = [#tpu.dimension_semantics<parallel>], iteration_bounds = array<i64: 1>, scalar_prefetch = 0 : i64, scratch_operands = 0 : i64, tpu.core_type = #tpu.core_type<tc>, window_params = [{pipeline_mode = #tpu.pipeline_mode<synchronous>, transform_indices = @transform_0, window_bounds = array<i64: 32, 16>}, {pipeline_mode = #tpu.pipeline_mode<synchronous>, transform_indices = @transform_1, window_bounds = array<i64: 16, 32>}, {transform_indices = @transform_2, window_bounds = array<i64: 8, 16, 16>}, {transform_indices = @transform_3, window_bounds = array<i64: 256, 32>}]} {
    %c0 = arith.constant 0 : index
    %c0_0 = arith.constant 0 : index
    %0 = vector.load %arg2[%c0, %c0_0] : memref<16x32xf32, #tpu.memory_space<vmem>>, vector<16x32xf32>
    %c0_1 = arith.constant 0 : index
    %c0_2 = arith.constant 0 : index
    %1 = vector.load %arg1[%c0_1, %c0_2] : memref<32x16xf32, #tpu.memory_space<vmem>>, vector<32x16xf32>
    %2 = vector.shape_cast %1 : vector<32x16xf32> to vector<1x32x16xf32>
    %3 = vector.broadcast %2 : vector<1x32x16xf32> to vector<8x32x16xf32>
    %c0_i32 = arith.constant 0 : i32
    %c1_i32 = arith.constant 1 : i32
    %4 = arith.muli %c0_i32, %c1_i32 : i32
    %c0_i32_3 = arith.constant 0 : i32
    %5 = arith.addi %c0_i32_3, %4 : i32
    %c8_i32 = arith.constant 8 : i32
    %6 = arith.muli %5, %c8_i32 : i32
    %7 = arith.index_cast %6 : i32 to index
    %c0_4 = arith.constant 0 : index
    %c0_5 = arith.constant 0 : index
    %8 = vector.load %arg3[%7, %c0_4, %c0_5] : memref<8x16x16xf32, #tpu.memory_space<vmem>>, vector<8x16x16xf32>
    "tpu.trace_start"() <{level = 10 : i32, message = "goh,ghw->gow"}> : () -> ()
    %cst = arith.constant dense<0.000000e+00> : vector<8x32x16xf32>
    %9 = tpu.matmul %3, %8, %cst {dimension_numbers = #tpu.dot_dimension_numbers<[2], [1], [1], [2], [0, 0, 0, 1, 1, 2], [0], [0]>} : vector<8x32x16xf32>, vector<8x16x16xf32>, vector<8x32x16xf32> -> vector<8x32x16xf32>
    "tpu.trace_stop"() : () -> ()
    %10 = vector.shape_cast %9 : vector<8x32x16xf32> to vector<256x16xf32>
    %cst_6 = arith.constant dense<0.000000e+00> : vector<256x32xf32>
    %11 = tpu.matmul %10, %0, %cst_6 {dimension_numbers = #tpu.dot_dimension_numbers<[1], [0], [0], [1], [0, 0, 1, 1], [], []>} : vector<256x16xf32>, vector<16x32xf32>, vector<256x32xf32> -> vector<256x32xf32>
    %c256_i32 = arith.constant 256 : i32
    %12 = arith.muli %5, %c256_i32 : i32
    %13 = arith.index_cast %12 : i32 to index
    %c0_7 = arith.constant 0 : index
    %14 = vector.load %arg4[%13, %c0_7] : memref<256x32xf32, #tpu.memory_space<vmem>>, vector<256x32xf32>
    tpu.vector_store %arg4[%13, %c0_7], %11 {strides = array<i32>} : memref<256x32xf32, #tpu.memory_space<vmem>>, vector<256x32xf32>,
    %c1_i32_8 = arith.constant 1 : i32
    return
  }
  func.func @transform_0(%arg0: i32) -> (i32, i32) {
    %c0_i32 = arith.constant 0 : i32
    %c0_i32_0 = arith.constant 0 : i32
    %c0_i32_1 = arith.constant 0 : i32
    return %c0_i32, %c0_i32_0 : i32, i32
  }
  func.func @transform_1(%arg0: i32) -> (i32, i32) {
    %c0_i32 = arith.constant 0 : i32
    %c0_i32_0 = arith.constant 0 : i32
    %c0_i32_1 = arith.constant 0 : i32
    return %c0_i32, %c0_i32_0 : i32, i32
  }
  func.func @transform_2(%arg0: i32) -> (i32, i32, i32) {
    %c0_i32 = arith.constant 0 : i32
    %c0_i32_0 = arith.constant 0 : i32
    %c0_i32_1 = arith.constant 0 : i32
    return %arg0, %c0_i32, %c0_i32_0 : i32, i32, i32
  }
  func.func @transform_3(%arg0: i32) -> (i32, i32) {
    %c0_i32 = arith.constant 0 : i32
    %c0_i32_0 = arith.constant 0 : i32
    return %arg0, %c0_i32 : i32, i32
  }
}

</mosaic_0001>

<llo_original>
// kernel: interpolate.1
$region0: #{interpolate.1}
  #allocation0 [shape = 'u32[]', space=smem, size = 0x4, offset = 0x4, fixed_abs, tag = 'smem constant byte address 0x4 - core index']
  #allocation1 [shape = 'u32[144,128]{1,0:T(1,128)}', space=vmem, size = 0x12000, scoped, tag = 'internal scratch']
  %s0 = inlined_call_operand.vmem [shape: f32[32,16], index: 0, kind: input, shape index: {}]
  %s1 = inlined_call_operand.vmem [shape: f32[16,32], index: 1, kind: input, shape index: {}]
  %s2 = inlined_call_operand.vmem [shape: f32[8,16,16], index: 2, kind: input, shape index: {}]
  %s3 = inlined_call_operand.hbm [shape: f32[256,32], index: 3, kind: output, shape index: {}]
  %s4 = sld [smem:[#allocation0]]
  $region22: #{interpolate.1} parent=0
    _
  %s6 = ssub.s32 1, %s4
  %s7 = scalar_select 0, %s6, %s4
  $region1: #{interpolate.1} parent=0
    #allocation2 [shape = 'u8[131072]{0}', space=vmem, size = 0x20000, scoped, tag = 'output window, operand 0, single buffered']
    #allocation3 [shape = 's32[1]{0}', space=sflag, size = 0x4, scoped, tag = 'scoped memory for interpolate.1']
    %8 = vsyncpa [#allocation3], 0
    // Predicated region
    $region2: #{interpolate.1} parent=1 // pred_check
      _
    $region3: #{interpolate.1} parent=1 // pred_check_branch
      %10 = sbr.rel (0) target = $region5
    $region4: #{interpolate.1} parent=1 // pred_region
      _
    $region5: #{interpolate.1} parent=1 // pred_fallthru
      _
    // Predicated region
    $region6: #{interpolate.1} parent=1 // pred_check
      _
    $region7: #{interpolate.1} parent=1 // pred_check_branch
      %12 = sbr.rel (0) target = $region9
    $region8: #{interpolate.1} parent=1 // pred_region
      _
    $region9: #{interpolate.1} parent=1 // pred_fallthru
      _
    // Predicated region
    $region10: #{interpolate.1} parent=1 // pred_check
      _
    $region11: #{interpolate.1} parent=1 // pred_check_branch
      %14 = sbr.rel (0) target = $region13
    $region12: #{interpolate.1} parent=1 // pred_region
      _
    $region13: #{interpolate.1} parent=1 // pred_fallthru
      _
    %v15 = vld [vmem:[%s1] sm:$0xff]
    %v16 = vld [vmem:[%s1 + $0x8] sm:$0xff]
    %v17 = vld [vmem:[%s0] sm:$0xff]
    %v18 = vld [vmem:[%s0 + $0x8] sm:$0xff]
    %v19 = vld [vmem:[%s0 + $0x10] sm:$0xff]
    %v20 = vld [vmem:[%s0 + $0x18] sm:$0xff]
    %v21 = vld [vmem:[%s2] sm:$0xff]
    %v22 = vld [vmem:[%s2 + $0x8] sm:$0xff]
    %v23 = vld [vmem:[%s2 + $0x10] sm:$0xff]
    %v24 = vld [vmem:[%s2 + $0x18] sm:$0xff]
    %v25 = vld [vmem:[%s2 + $0x20] sm:$0xff]
    %v26 = vld [vmem:[%s2 + $0x28] sm:$0xff]
    %v27 = vld [vmem:[%s2 + $0x30] sm:$0xff]
    %v28 = vld [vmem:[%s2 + $0x38] sm:$0xff]
    %v29 = vld [vmem:[%s2 + $0x40] sm:$0xff]
    %v30 = vld [vmem:[%s2 + $0x48] sm:$0xff]
    %v31 = vld [vmem:[%s2 + $0x50] sm:$0xff]
    %v32 = vld [vmem:[%s2 + $0x58] sm:$0xff]
    %v33 = vld [vmem:[%s2 + $0x60] sm:$0xff]
    %v34 = vld [vmem:[%s2 + $0x68] sm:$0xff]
    %v35 = vld [vmem:[%s2 + $0x70] sm:$0xff]
    %v36 = vld [vmem:[%s2 + $0x78] sm:$0xff]
    %vm37 = vcmask 130048
    %v39 = vsel %vm37, %v17, 0
    %v42 = vsel %vm37, %v18, 0
    %v45 = vsel %vm37, %v19, 0
    %v48 = vsel %vm37, %v20, 0
    %50 = vmatprep.subr.mxu0 0.0
    %51 = vmatpush1.msra.mxu0 %v21
    %52 = vmatprep.subr.mxu0 0.0
    %53 = vmatpush1.msra.mxu0 %v22
    %54 = vmatprep.subr.mxu0 0.0
    %55 = vmatpush1.msra.mxu0 0.0
    %56 = vmatprep.subr.mxu0 0.0
    %57 = vmatpush1.msra.mxu0 0.0
    %58 = vmatprep.subr.mxu0 0.0
    %59 = vmatpush1.msra.mxu0 0.0
    %60 = vmatprep.subr.mxu0 0.0
    %61 = vmatpush1.msra.mxu0 0.0
    %62 = vmatprep.subr.mxu0 0.0
    %63 = vmatpush1.msra.mxu0 0.0
    %64 = vmatprep.subr.mxu0 0.0
    %65 = vmatpush1.msra.mxu0 0.0
    %66 = vmatprep.subr.mxu0 0.0
    %67 = vmatpush1.msra.mxu0 0.0
    %68 = vmatprep.subr.mxu0 0.0
    %69 = vmatpush1.msra.mxu0 0.0
    %70 = vmatprep.subr.mxu0 0.0
    %71 = vmatpush1.msra.mxu0 0.0
    %72 = vmatprep.subr.mxu0 0.0
    %73 = vmatpush1.msra.mxu0 0.0
    %74 = vmatprep.subr.mxu0 0.0
    %75 = vmatpush1.msra.mxu0 0.0
    %76 = vmatprep.subr.mxu0 0.0
    %77 = vmatpush1.msra.mxu0 0.0
    %78 = vmatprep.subr.mxu0 0.0
    %79 = vmatpush1.msra.mxu0 0.0
    %80 = vmatprep.subr.mxu0 0.0
    %81 = vmatpush1.msra.mxu0 0.0
    %82 = vmatprep.subr.mxu0 0.0
    %83 = vmatpush1.msra.mxu0 0.0
    %84 = vmatprep.subr.mxu0 0.0
    %85 = vmatpush1.msra.mxu0 0.0
    %86 = vmatprep.subr.mxu0 0.0
    %87 = vmatpush1.msra.mxu0 0.0
    %88 = vmatprep.subr.mxu0 0.0
    %89 = vmatpush1.msra.mxu0 0.0
    %90 = vmatprep.subr.mxu0 0.0
    %91 = vmatpush1.msra.mxu0 0.0
    %92 = vmatprep.subr.mxu0 0.0
    %93 = vmatpush1.msra.mxu0 0.0
    %94 = vmatprep.subr.mxu0 0.0
    %95 = vmatpush1.msra.mxu0 0.0
    %96 = vmatprep.subr.mxu0 0.0
    %97 = vmatpush1.msra.mxu0 0.0
    %98 = vmatprep.subr.mxu0 0.0
    %99 = vmatpush1.msra.mxu0 0.0
    %100 = vmatprep.subr.mxu0 0.0
    %101 = vmatpush1.msra.mxu0 0.0
    %102 = vmatprep.subr.mxu0 0.0
    %103 = vmatpush1.msra.mxu0 0.0
    %104 = vmatprep.subr.mxu0 0.0
    %105 = vmatpush1.msra.mxu0 0.0
    %106 = vmatprep.subr.mxu0 0.0
    %107 = vmatpush1.msra.mxu0 0.0
    %108 = vmatprep.subr.mxu0 0.0
    %109 = vmatpush1.msra.mxu0 0.0
    %110 = vmatprep.subr.mxu0 0.0
    %111 = vmatpush1.msra.mxu0 0.0
    %112 = vmatprep.subr.mxu0 0.0
    %113 = vmatpush1.msra.mxu0 0.0
    %114 = vmatprep.mubr.f32.mxu0 0.0
    %115 = vmatmul.mubr.f32.gmra.mrb[0].mxu0 %v39
    %v116 = vpop.f32.mrb[0].mxu0
    %v117 = vadd.f32 0.0, %v116
    %v118 = vpop.f32.mrb[0].mxu0
    %119 = vmatprep.mubr.f32.mxu0 0.0
    %120 = vmatmul.mubr.f32.gmra.mrb[0].mxu0 %v42
    %v121 = vpop.f32.mrb[0].mxu0
    %v122 = vadd.f32 0.0, %v121
    %v123 = vpop.f32.mrb[0].mxu0
    %124 = vmatprep.mubr.f32.mxu0 0.0
    %125 = vmatmul.mubr.f32.gmra.mrb[0].mxu0 %v45
    %v126 = vpop.f32.mrb[0].mxu0
    %v127 = vadd.f32 0.0, %v126
    %v128 = vpop.f32.mrb[0].mxu0
    %129 = vmatprep.mubr.f32.mxu0 0.0
    %130 = vmatmul.mubr.f32.gmra.mrb[0].mxu0 %v48
    %v131 = vpop.f32.mrb[0].mxu0
    %v132 = vadd.f32 0.0, %v131
    %v133 = vpop.f32.mrb[0].mxu0
    %134 = vdwg.mxu0
    %135 = vmatprep.subr.mxu0 0.0
    %136 = vmatpush1.msra.mxu0 %v23
    %137 = vmatprep.subr.mxu0 0.0
    %138 = vmatpush1.msra.mxu0 %v24
    %139 = vmatprep.subr.mxu0 0.0
    %140 = vmatpush1.msra.mxu0 0.0
    %141 = vmatprep.subr.mxu0 0.0
    %142 = vmatpush1.msra.mxu0 0.0
    %143 = vmatprep.subr.mxu0 0.0
    %144 = vmatpush1.msra.mxu0 0.0
    %145 = vmatprep.subr.mxu0 0.0
    %146 = vmatpush1.msra.mxu0 0.0
    %147 = vmatprep.subr.mxu0 0.0
    %148 = vmatpush1.msra.mxu0 0.0
    %149 = vmatprep.subr.mxu0 0.0
    %150 = vmatpush1.msra.mxu0 0.0
    %151 = vmatprep.subr.mxu0 0.0
    %152 = vmatpush1.msra.mxu0 0.0
    %153 = vmatprep.subr.mxu0 0.0
    %154 = vmatpush1.msra.mxu0 0.0
    %155 = vmatprep.subr.mxu0 0.0
    %156 = vmatpush1.msra.mxu0 0.0
    %157 = vmatprep.subr.mxu0 0.0
    %158 = vmatpush1.msra.mxu0 0.0
    %159 = vmatprep.subr.mxu0 0.0
    %160 = vmatpush1.msra.mxu0 0.0
    %161 = vmatprep.subr.mxu0 0.0
    %162 = vmatpush1.msra.mxu0 0.0
    %163 = vmatprep.subr.mxu0 0.0
    %164 = vmatpush1.msra.mxu0 0.0
    %165 = vmatprep.subr.mxu0 0.0
    %166 = vmatpush1.msra.mxu0 0.0
    %167 = vmatprep.subr.mxu0 0.0
    %168 = vmatpush1.msra.mxu0 0.0
    %169 = vmatprep.subr.mxu0 0.0
    %170 = vmatpush1.msra.mxu0 0.0
    %171 = vmatprep.subr.mxu0 0.0
    %172 = vmatpush1.msra.mxu0 0.0
    %173 = vmatprep.subr.mxu0 0.0
    %174 = vmatpush1.msra.mxu0 0.0
    %175 = vmatprep.subr.mxu0 0.0
    %176 = vmatpush1.msra.mxu0 0.0
    %177 = vmatprep.subr.mxu0 0.0
    %178 = vmatpush1.msra.mxu0 0.0
    %179 = vmatprep.subr.mxu0 0.0
    %180 = vmatpush1.msra.mxu0 0.0
    %181 = vmatprep.subr.mxu0 0.0
    %182 = vmatpush1.msra.mxu0 0.0
    %183 = vmatprep.subr.mxu0 0.0
    %184 = vmatpush1.msra.mxu0 0.0
    %185 = vmatprep.subr.mxu0 0.0
    %186 = vmatpush1.msra.mxu0 0.0
    %187 = vmatprep.subr.mxu0 0.0
    %188 = vmatpush1.msra.mxu0 0.0
    %189 = vmatprep.subr.mxu0 0.0
    %190 = vmatpush1.msra.mxu0 0.0
    %191 = vmatprep.subr.mxu0 0.0
    %192 = vmatpush1.msra.mxu0 0.0
    %193 = vmatprep.subr.mxu0 0.0
    %194 = vmatpush1.msra.mxu0 0.0
    %195 = vmatprep.subr.mxu0 0.0
    %196 = vmatpush1.msra.mxu0 0.0
    %197 = vmatprep.subr.mxu0 0.0
    %198 = vmatpush1.msra.mxu0 0.0
    %199 = vmatprep.mubr.f32.mxu0 0.0
    %200 = vmatmul.mubr.f32.gmra.mrb[0].mxu0 %v39
    %v201 = vpop.f32.mrb[0].mxu0
    %v202 = vadd.f32 0.0, %v201
    %v203 = vpop.f32.mrb[0].mxu0
    %204 = vmatprep.mubr.f32.mxu0 0.0
    %205 = vmatmul.mubr.f32.gmra.mrb[0].mxu0 %v42
    %v206 = vpop.f32.mrb[0].mxu0
    %v207 = vadd.f32 0.0, %v206
    %v208 = vpop.f32.mrb[0].mxu0
    %209 = vmatprep.mubr.f32.mxu0 0.0
    %210 = vmatmul.mubr.f32.gmra.mrb[0].mxu0 %v45
    %v211 = vpop.f32.mrb[0].mxu0
    %v212 = vadd.f32 0.0, %v211
    %v213 = vpop.f32.mrb[0].mxu0
    %214 = vmatprep.mubr.f32.mxu0 0.0
    %215 = vmatmul.mubr.f32.gmra.mrb[0].mxu0 %v48
    %v216 = vpop.f32.mrb[0].mxu0
    %v217 = vadd.f32 0.0, %v216
    %v218 = vpop.f32.mrb[0].mxu0
    %219 = vdwg.mxu0
    %220 = vmatprep.subr.mxu0 0.0
    %221 = vmatpush1.msra.mxu0 %v25
    %222 = vmatprep.subr.mxu0 0.0
    %223 = vmatpush1.msra.mxu0 %v26
    %224 = vmatprep.subr.mxu0 0.0
    %225 = vmatpush1.msra.mxu0 0.0
    %226 = vmatprep.subr.mxu0 0.0
    %227 = vmatpush1.msra.mxu0 0.0
    %228 = vmatprep.subr.mxu0 0.0
    %229 = vmatpush1.msra.mxu0 0.0
    %230 = vmatprep.subr.mxu0 0.0
    %231 = vmatpush1.msra.mxu0 0.0
    %232 = vmatprep.subr.mxu0 0.0
    %233 = vmatpush1.msra.mxu0 0.0
    %234 = vmatprep.subr.mxu0 0.0
    %235 = vmatpush1.msra.mxu0 0.0
    %236 = vmatprep.subr.mxu0 0.0
    %237 = vmatpush1.msra.mxu0 0.0
    %238 = vmatprep.subr.mxu0 0.0
    %239 = vmatpush1.msra.mxu0 0.0
    %240 = vmatprep.subr.mxu0 0.0
    %241 = vmatpush1.msra.mxu0 0.0
    %242 = vmatprep.subr.mxu0 0.0
    %243 = vmatpush1.msra.mxu0 0.0
    %244 = vmatprep.subr.mxu0 0.0
    %245 = vmatpush1.msra.mxu0 0.0
    %246 = vmatprep.subr.mxu0 0.0
    %247 = vmatpush1.msra.mxu0 0.0
    %248 = vmatprep.subr.mxu0 0.0
    %249 = vmatpush1.msra.mxu0 0.0
    %250 = vmatprep.subr.mxu0 0.0
    %251 = vmatpush1.msra.mxu0 0.0
    %252 = vmatprep.subr.mxu0 0.0
    %253 = vmatpush1.msra.mxu0 0.0
    %254 = vmatprep.subr.mxu0 0.0
    %255 = vmatpush1.msra.mxu0 0.0
    %256 = vmatprep.subr.mxu0 0.0
    %257 = vmatpush1.msra.mxu0 0.0
    %258 = vmatprep.subr.mxu0 0.0
    %259 = vmatpush1.msra.mxu0 0.0
    %260 = vmatprep.subr.mxu0 0.0
    %261 = vmatpush1.msra.mxu0 0.0
    %262 = vmatprep.subr.mxu0 0.0
    %263 = vmatpush1.msra.mxu0 0.0
    %264 = vmatprep.subr.mxu0 0.0
    %265 = vmatpush1.msra.mxu0 0.0
    %266 = vmatprep.subr.mxu0 0.0
    %267 = vmatpush1.msra.mxu0 0.0
    %268 = vmatprep.subr.mxu0 0.0
    %269 = vmatpush1.msra.mxu0 0.0
    %270 = vmatprep.subr.mxu0 0.0
    %271 = vmatpush1.msra.mxu0 0.0
    %272 = vmatprep.subr.mxu0 0.0
    %273 = vmatpush1.msra.mxu0 0.0
    %274 = vmatprep.subr.mxu0 0.0
    %275 = vmatpush1.msra.mxu0 0.0
    %276 = vmatprep.subr.mxu0 0.0
    %277 = vmatpush1.msra.mxu0 0.0
    %278 = vmatprep.subr.mxu0 0.0
    %279 = vmatpush1.msra.mxu0 0.0
    %280 = vmatprep.subr.mxu0 0.0
    %281 = vmatpush1.msra.mxu0 0.0
    %282 = vmatprep.subr.mxu0 0.0
    %283 = vmatpush1.msra.mxu0 0.0
    %284 = vmatprep.mubr.f32.mxu0 0.0
    %285 = vmatmul.mubr.f32.gmra.mrb[0].mxu0 %v39
    %v286 = vpop.f32.mrb[0].mxu0
    %v287 = vadd.f32 0.0, %v286
    %v288 = vpop.f32.mrb[0].mxu0
    %289 = vmatprep.mubr.f32.mxu0 0.0
    %290 = vmatmul.mubr.f32.gmra.mrb[0].mxu0 %v42
    %v291 = vpop.f32.mrb[0].mxu0
    %v292 = vadd.f32 0.0, %v291
    %v293 = vpop.f32.mrb[0].mxu0
    %294 = vmatprep.mubr.f32.mxu0 0.0
    %295 = vmatmul.mubr.f32.gmra.mrb[0].mxu0 %v45
    %v296 = vpop.f32.mrb[0].mxu0
    %v297 = vadd.f32 0.0, %v296
    %v298 = vpop.f32.mrb[0].mxu0
    %299 = vmatprep.mubr.f32.mxu0 0.0
    %300 = vmatmul.mubr.f32.gmra.mrb[0].mxu0 %v48
    %v301 = vpop.f32.mrb[0].mxu0
    %v302 = vadd.f32 0.0, %v301
    %v303 = vpop.f32.mrb[0].mxu0
    %304 = vdwg.mxu0
    %305 = vmatprep.subr.mxu0 0.0
    %306 = vmatpush1.msra.mxu0 %v27
    %307 = vmatprep.subr.mxu0 0.0
    %308 = vmatpush1.msra.mxu0 %v28
    %309 = vmatprep.subr.mxu0 0.0
    %310 = vmatpush1.msra.mxu0 0.0
    %311 = vmatprep.subr.mxu0 0.0
    %312 = vmatpush1.msra.mxu0 0.0
    %313 = vmatprep.subr.mxu0 0.0
    %314 = vmatpush1.msra.mxu0 0.0
    %315 = vmatprep.subr.mxu0 0.0
    %316 = vmatpush1.msra.mxu0 0.0
    %317 = vmatprep.subr.mxu0 0.0
    %318 = vmatpush1.msra.mxu0 0.0
    %319 = vmatprep.subr.mxu0 0.0
    %320 = vmatpush1.msra.mxu0 0.0
    %321 = vmatprep.subr.mxu0 0.0
    %322 = vmatpush1.msra.mxu0 0.0
    %323 = vmatprep.subr.mxu0 0.0
    %324 = vmatpush1.msra.mxu0 0.0
    %325 = vmatprep.subr.mxu0 0.0
    %326 = vmatpush1.msra.mxu0 0.0
    %327 = vmatprep.subr.mxu0 0.0
    %328 = vmatpush1.msra.mxu0 0.0
    %329 = vmatprep.subr.mxu0 0.0
    %330 = vmatpush1.msra.mxu0 0.0
    %331 = vmatprep.subr.mxu0 0.0
    %332 = vmatpush1.msra.mxu0 0.0
    %333 = vmatprep.subr.mxu0 0.0
    %334 = vmatpush1.msra.mxu0 0.0
    %335 = vmatprep.subr.mxu0 0.0
    %336 = vmatpush1.msra.mxu0 0.0
    %337 = vmatprep.subr.mxu0 0.0
    %338 = vmatpush1.msra.mxu0 0.0
    %339 = vmatprep.subr.mxu0 0.0
    %340 = vmatpush1.msra.mxu0 0.0
    %341 = vmatprep.subr.mxu0 0.0
    %342 = vmatpush1.msra.mxu0 0.0
    %343 = vmatprep.subr.mxu0 0.0
    %344 = vmatpush1.msra.mxu0 0.0
    %345 = vmatprep.subr.mxu0 0.0
    %346 = vmatpush1.msra.mxu0 0.0
    %347 = vmatprep.subr.mxu0 0.0
    %348 = vmatpush1.msra.mxu0 0.0
    %349 = vmatprep.subr.mxu0 0.0
    %350 = vmatpush1.msra.mxu0 0.0
    %351 = vmatprep.subr.mxu0 0.0
    %352 = vmatpush1.msra.mxu0 0.0
    %353 = vmatprep.subr.mxu0 0.0
    %354 = vmatpush1.msra.mxu0 0.0
    %355 = vmatprep.subr.mxu0 0.0
    %356 = vmatpush1.msra.mxu0 0.0
    %357 = vmatprep.subr.mxu0 0.0
    %358 = vmatpush1.msra.mxu0 0.0
    %359 = vmatprep.subr.mxu0 0.0
    %360 = vmatpush1.msra.mxu0 0.0
    %361 = vmatprep.subr.mxu0 0.0
    %362 = vmatpush1.msra.mxu0 0.0
    %363 = vmatprep.subr.mxu0 0.0
    %364 = vmatpush1.msra.mxu0 0.0
    %365 = vmatprep.subr.mxu0 0.0
    %366 = vmatpush1.msra.mxu0 0.0
    %367 = vmatprep.subr.mxu0 0.0
    %368 = vmatpush1.msra.mxu0 0.0
    %369 = vmatprep.mubr.f32.mxu0 0.0
    %370 = vmatmul.mubr.f32.gmra.mrb[0].mxu0 %v39
    %v371 = vpop.f32.mrb[0].mxu0
    %v372 = vadd.f32 0.0, %v371
    %v373 = vpop.f32.mrb[0].mxu0
    %374 = vmatprep.mubr.f32.mxu0 0.0
    %375 = vmatmul.mubr.f32.gmra.mrb[0].mxu0 %v42
    %v376 = vpop.f32.mrb[0].mxu0
    %v377 = vadd.f32 0.0, %v376
    %v378 = vpop.f32.mrb[0].mxu0
    %379 = vmatprep.mubr.f32.mxu0 0.0
    %380 = vmatmul.mubr.f32.gmra.mrb[0].mxu0 %v45
    %v381 = vpop.f32.mrb[0].mxu0
    %v382 = vadd.f32 0.0, %v381
    %v383 = vpop.f32.mrb[0].mxu0
    %384 = vmatprep.mubr.f32.mxu0 0.0
    %385 = vmatmul.mubr.f32.gmra.mrb[0].mxu0 %v48
    %v386 = vpop.f32.mrb[0].mxu0
    %v387 = vadd.f32 0.0, %v386
    %v388 = vpop.f32.mrb[0].mxu0
    %389 = vdwg.mxu0
    %390 = vmatprep.subr.mxu0 0.0
    %391 = vmatpush1.msra.mxu0 %v29
    %392 = vmatprep.subr.mxu0 0.0
    %393 = vmatpush1.msra.mxu0 %v30
    %394 = vmatprep.subr.mxu0 0.0
    %395 = vmatpush1.msra.mxu0 0.0
    %396 = vmatprep.subr.mxu0 0.0
    %397 = vmatpush1.msra.mxu0 0.0
    %398 = vmatprep.subr.mxu0 0.0
    %399 = vmatpush1.msra.mxu0 0.0
    %400 = vmatprep.subr.mxu0 0.0
    %401 = vmatpush1.msra.mxu0 0.0
    %402 = vmatprep.subr.mxu0 0.0
    %403 = vmatpush1.msra.mxu0 0.0
    %404 = vmatprep.subr.mxu0 0.0
    %405 = vmatpush1.msra.mxu0 0.0
    %406 = vmatprep.subr.mxu0 0.0
    %407 = vmatpush1.msra.mxu0 0.0
    %408 = vmatprep.subr.mxu0 0.0
    %409 = vmatpush1.msra.mxu0 0.0
    %410 = vmatprep.subr.mxu0 0.0
    %411 = vmatpush1.msra.mxu0 0.0
    %412 = vmatprep.subr.mxu0 0.0
    %413 = vmatpush1.msra.mxu0 0.0
    %414 = vmatprep.subr.mxu0 0.0
    %415 = vmatpush1.msra.mxu0 0.0
    %416 = vmatprep.subr.mxu0 0.0
    %417 = vmatpush1.msra.mxu0 0.0
    %418 = vmatprep.subr.mxu0 0.0
    %419 = vmatpush1.msra.mxu0 0.0
    %420 = vmatprep.subr.mxu0 0.0
    %421 = vmatpush1.msra.mxu0 0.0
    %422 = vmatprep.subr.mxu0 0.0
    %423 = vmatpush1.msra.mxu0 0.0
    %424 = vmatprep.subr.mxu0 0.0
    %425 = vmatpush1.msra.mxu0 0.0
    %426 = vmatprep.subr.mxu0 0.0
    %427 = vmatpush1.msra.mxu0 0.0
    %428 = vmatprep.subr.mxu0 0.0
    %429 = vmatpush1.msra.mxu0 0.0
    %430 = vmatprep.subr.mxu0 0.0
    %431 = vmatpush1.msra.mxu0 0.0
    %432 = vmatprep.subr.mxu0 0.0
    %433 = vmatpush1.msra.mxu0 0.0
    %434 = vmatprep.subr.mxu0 0.0
    %435 = vmatpush1.msra.mxu0 0.0
    %436 = vmatprep.subr.mxu0 0.0
    %437 = vmatpush1.msra.mxu0 0.0
    %438 = vmatprep.subr.mxu0 0.0
    %439 = vmatpush1.msra.mxu0 0.0
    %440 = vmatprep.subr.mxu0 0.0
    %441 = vmatpush1.msra.mxu0 0.0
    %442 = vmatprep.subr.mxu0 0.0
    %443 = vmatpush1.msra.mxu0 0.0
    %444 = vmatprep.subr.mxu0 0.0
    %445 = vmatpush1.msra.mxu0 0.0
    %446 = vmatprep.subr.mxu0 0.0
    %447 = vmatpush1.msra.mxu0 0.0
    %448 = vmatprep.subr.mxu0 0.0
    %449 = vmatpush1.msra.mxu0 0.0
    %450 = vmatprep.subr.mxu0 0.0
    %451 = vmatpush1.msra.mxu0 0.0
    %452 = vmatprep.subr.mxu0 0.0
    %453 = vmatpush1.msra.mxu0 0.0
    %454 = vmatprep.mubr.f32.mxu0 0.0
    %455 = vmatmul.mubr.f32.gmra.mrb[0].mxu0 %v39
    %v456 = vpop.f32.mrb[0].mxu0
    %v457 = vadd.f32 0.0, %v456
    %v458 = vpop.f32.mrb[0].mxu0
    %459 = vmatprep.mubr.f32.mxu0 0.0
    %460 = vmatmul.mubr.f32.gmra.mrb[0].mxu0 %v42
    %v461 = vpop.f32.mrb[0].mxu0
    %v462 = vadd.f32 0.0, %v461
    %v463 = vpop.f32.mrb[0].mxu0
    %464 = vmatprep.mubr.f32.mxu0 0.0
    %465 = vmatmul.mubr.f32.gmra.mrb[0].mxu0 %v45
    %v466 = vpop.f32.mrb[0].mxu0
    %v467 = vadd.f32 0.0, %v466
    %v468 = vpop.f32.mrb[0].mxu0
    %469 = vmatprep.mubr.f32.mxu0 0.0
    %470 = vmatmul.mubr.f32.gmra.mrb[0].mxu0 %v48
    %v471 = vpop.f32.mrb[0].mxu0
    %v472 = vadd.f32 0.0, %v471
    %v473 = vpop.f32.mrb[0].mxu0
    %474 = vdwg.mxu0
    %475 = vmatprep.subr.mxu0 0.0
    %476 = vmatpush1.msra.mxu0 %v31
    %477 = vmatprep.subr.mxu0 0.0
    %478 = vmatpush1.msra.mxu0 %v32
    %479 = vmatprep.subr.mxu0 0.0
    %480 = vmatpush1.msra.mxu0 0.0
    %481 = vmatprep.subr.mxu0 0.0
    %482 = vmatpush1.msra.mxu0 0.0
    %483 = vmatprep.subr.mxu0 0.0
    %484 = vmatpush1.msra.mxu0 0.0
    %485 = vmatprep.subr.mxu0 0.0
    %486 = vmatpush1.msra.mxu0 0.0
    %487 = vmatprep.subr.mxu0 0.0
    %488 = vmatpush1.msra.mxu0 0.0
    %489 = vmatprep.subr.mxu0 0.0
    %490 = vmatpush1.msra.mxu0 0.0
    %491 = vmatprep.subr.mxu0 0.0
    %492 = vmatpush1.msra.mxu0 0.0
    %493 = vmatprep.subr.mxu0 0.0
    %494 = vmatpush1.msra.mxu0 0.0
    %495 = vmatprep.subr.mxu0 0.0
    %496 = vmatpush1.msra.mxu0 0.0
    %497 = vmatprep.subr.mxu0 0.0
    %498 = vmatpush1.msra.mxu0 0.0
    %499 = vmatprep.subr.mxu0 0.0
    %500 = vmatpush1.msra.mxu0 0.0
    %501 = vmatprep.subr.mxu0 0.0
    %502 = vmatpush1.msra.mxu0 0.0
    %503 = vmatprep.subr.mxu0 0.0
    %504 = vmatpush1.msra.mxu0 0.0
    %505 = vmatprep.subr.mxu0 0.0
    %506 = vmatpush1.msra.mxu0 0.0
    %507 = vmatprep.subr.mxu0 0.0
    %508 = vmatpush1.msra.mxu0 0.0
    %509 = vmatprep.subr.mxu0 0.0
    %510 = vmatpush1.msra.mxu0 0.0
    %511 = vmatprep.subr.mxu0 0.0
    %512 = vmatpush1.msra.mxu0 0.0
    %513 = vmatprep.subr.mxu0 0.0
    %514 = vmatpush1.msra.mxu0 0.0
    %515 = vmatprep.subr.mxu0 0.0
    %516 = vmatpush1.msra.mxu0 0.0
    %517 = vmatprep.subr.mxu0 0.0
    %518 = vmatpush1.msra.mxu0 0.0
    %519 = vmatprep.subr.mxu0 0.0
    %520 = vmatpush1.msra.mxu0 0.0
    %521 = vmatprep.subr.mxu0 0.0
    %522 = vmatpush1.msra.mxu0 0.0
    %523 = vmatprep.subr.mxu0 0.0
    %524 = vmatpush1.msra.mxu0 0.0
    %525 = vmatprep.subr.mxu0 0.0
    %526 = vmatpush1.msra.mxu0 0.0
    %527 = vmatprep.subr.mxu0 0.0
    %528 = vmatpush1.msra.mxu0 0.0
    %529 = vmatprep.subr.mxu0 0.0
    %530 = vmatpush1.msra.mxu0 0.0
    %531 = vmatprep.subr.mxu0 0.0
    %532 = vmatpush1.msra.mxu0 0.0
    %533 = vmatprep.subr.mxu0 0.0
    %534 = vmatpush1.msra.mxu0 0.0
    %535 = vmatprep.subr.mxu0 0.0
    %536 = vmatpush1.msra.mxu0 0.0
    %537 = vmatprep.subr.mxu0 0.0
    %538 = vmatpush1.msra.mxu0 0.0
    %539 = vmatprep.mubr.f32.mxu0 0.0
    %540 = vmatmul.mubr.f32.gmra.mrb[0].mxu0 %v39
    %v541 = vpop.f32.mrb[0].mxu0
    %v542 = vadd.f32 0.0, %v541
    %v543 = vpop.f32.mrb[0].mxu0
    %544 = vmatprep.mubr.f32.mxu0 0.0
    %545 = vmatmul.mubr.f32.gmra.mrb[0].mxu0 %v42
    %v546 = vpop.f32.mrb[0].mxu0
    %v547 = vadd.f32 0.0, %v546
    %v548 = vpop.f32.mrb[0].mxu0
    %549 = vmatprep.mubr.f32.mxu0 0.0
    %550 = vmatmul.mubr.f32.gmra.mrb[0].mxu0 %v45
    %v551 = vpop.f32.mrb[0].mxu0
    %v552 = vadd.f32 0.0, %v551
    %v553 = vpop.f32.mrb[0].mxu0
    %554 = vmatprep.mubr.f32.mxu0 0.0
    %555 = vmatmul.mubr.f32.gmra.mrb[0].mxu0 %v48
    %v556 = vpop.f32.mrb[0].mxu0
    %v557 = vadd.f32 0.0, %v556
    %v558 = vpop.f32.mrb[0].mxu0
    %559 = vdwg.mxu0
    %560 = vmatprep.subr.mxu0 0.0
    %561 = vmatpush1.msra.mxu0 %v33
    %562 = vmatprep.subr.mxu0 0.0
    %563 = vmatpush1.msra.mxu0 %v34
    %564 = vmatprep.subr.mxu0 0.0
    %565 = vmatpush1.msra.mxu0 0.0
    %566 = vmatprep.subr.mxu0 0.0
    %567 = vmatpush1.msra.mxu0 0.0
    %568 = vmatprep.subr.mxu0 0.0
    %569 = vmatpush1.msra.mxu0 0.0
    %570 = vmatprep.subr.mxu0 0.0
    %571 = vmatpush1.msra.mxu0 0.0
    %572 = vmatprep.subr.mxu0 0.0
    %573 = vmatpush1.msra.mxu0 0.0
    %574 = vmatprep.subr.mxu0 0.0
    %575 = vmatpush1.msra.mxu0 0.0
    %576 = vmatprep.subr.mxu0 0.0
    %577 = vmatpush1.msra.mxu0 0.0
    %578 = vmatprep.subr.mxu0 0.0
    %579 = vmatpush1.msra.mxu0 0.0
    %580 = vmatprep.subr.mxu0 0.0
    %581 = vmatpush1.msra.mxu0 0.0
    %582 = vmatprep.subr.mxu0 0.0
    %583 = vmatpush1.msra.mxu0 0.0
    %584 = vmatprep.subr.mxu0 0.0
    %585 = vmatpush1.msra.mxu0 0.0
    %586 = vmatprep.subr.mxu0 0.0
    %587 = vmatpush1.msra.mxu0 0.0
    %588 = vmatprep.subr.mxu0 0.0
    %589 = vmatpush1.msra.mxu0 0.0
    %590 = vmatprep.subr.mxu0 0.0
    %591 = vmatpush1.msra.mxu0 0.0
    %592 = vmatprep.subr.mxu0 0.0
    %593 = vmatpush1.msra.mxu0 0.0
    %594 = vmatprep.subr.mxu0 0.0
    %595 = vmatpush1.msra.mxu0 0.0
    %596 = vmatprep.subr.mxu0 0.0
    %597 = vmatpush1.msra.mxu0 0.0
    %598 = vmatprep.subr.mxu0 0.0
    %599 = vmatpush1.msra.mxu0 0.0
    %600 = vmatprep.subr.mxu0 0.0
    %601 = vmatpush1.msra.mxu0 0.0
    %602 = vmatprep.subr.mxu0 0.0
    %603 = vmatpush1.msra.mxu0 0.0
    %604 = vmatprep.subr.mxu0 0.0
    %605 = vmatpush1.msra.mxu0 0.0
    %606 = vmatprep.subr.mxu0 0.0
    %607 = vmatpush1.msra.mxu0 0.0
    %608 = vmatprep.subr.mxu0 0.0
    %609 = vmatpush1.msra.mxu0 0.0
    %610 = vmatprep.subr.mxu0 0.0
    %611 = vmatpush1.msra.mxu0 0.0
    %612 = vmatprep.subr.mxu0 0.0
    %613 = vmatpush1.msra.mxu0 0.0
    %614 = vmatprep.subr.mxu0 0.0
    %615 = vmatpush1.msra.mxu0 0.0
    %616 = vmatprep.subr.mxu0 0.0
    %617 = vmatpush1.msra.mxu0 0.0
    %618 = vmatprep.subr.mxu0 0.0
    %619 = vmatpush1.msra.mxu0 0.0
    %620 = vmatprep.subr.mxu0 0.0
    %621 = vmatpush1.msra.mxu0 0.0
    %622 = vmatprep.subr.mxu0 0.0
    %623 = vmatpush1.msra.mxu0 0.0
    %624 = vmatprep.mubr.f32.mxu0 0.0
    %625 = vmatmul.mubr.f32.gmra.mrb[0].mxu0 %v39
    %v626 = vpop.f32.mrb[0].mxu0
    %v627 = vadd.f32 0.0, %v626
    %v628 = vpop.f32.mrb[0].mxu0
    %629 = vmatprep.mubr.f32.mxu0 0.0
    %630 = vmatmul.mubr.f32.gmra.mrb[0].mxu0 %v42
    %v631 = vpop.f32.mrb[0].mxu0
    %v632 = vadd.f32 0.0, %v631
    %v633 = vpop.f32.mrb[0].mxu0
    %634 = vmatprep.mubr.f32.mxu0 0.0
    %635 = vmatmul.mubr.f32.gmra.mrb[0].mxu0 %v45
    %v636 = vpop.f32.mrb[0].mxu0
    %v637 = vadd.f32 0.0, %v636
    %v638 = vpop.f32.mrb[0].mxu0
    %639 = vmatprep.mubr.f32.mxu0 0.0
    %640 = vmatmul.mubr.f32.gmra.mrb[0].mxu0 %v48
    %v641 = vpop.f32.mrb[0].mxu0
    %v642 = vadd.f32 0.0, %v641
    %v643 = vpop.f32.mrb[0].mxu0
    %644 = vdwg.mxu0
    %645 = vmatprep.subr.mxu0 0.0
    %646 = vmatpush1.msra.mxu0 %v35
    %647 = vmatprep.subr.mxu0 0.0
    %648 = vmatpush1.msra.mxu0 %v36
    %649 = vmatprep.subr.mxu0 0.0
    %650 = vmatpush1.msra.mxu0 0.0
    %651 = vmatprep.subr.mxu0 0.0
    %652 = vmatpush1.msra.mxu0 0.0
    %653 = vmatprep.subr.mxu0 0.0
    %654 = vmatpush1.msra.mxu0 0.0
    %655 = vmatprep.subr.mxu0 0.0
    %656 = vmatpush1.msra.mxu0 0.0
    %657 = vmatprep.subr.mxu0 0.0
    %658 = vmatpush1.msra.mxu0 0.0
    %659 = vmatprep.subr.mxu0 0.0
    %660 = vmatpush1.msra.mxu0 0.0
    %661 = vmatprep.subr.mxu0 0.0
    %662 = vmatpush1.msra.mxu0 0.0
    %663 = vmatprep.subr.mxu0 0.0
    %664 = vmatpush1.msra.mxu0 0.0
    %665 = vmatprep.subr.mxu0 0.0
    %666 = vmatpush1.msra.mxu0 0.0
    %667 = vmatprep.subr.mxu0 0.0
    %668 = vmatpush1.msra.mxu0 0.0
    %669 = vmatprep.subr.mxu0 0.0
    %670 = vmatpush1.msra.mxu0 0.0
    %671 = vmatprep.subr.mxu0 0.0
    %672 = vmatpush1.msra.mxu0 0.0
    %673 = vmatprep.subr.mxu0 0.0
    %674 = vmatpush1.msra.mxu0 0.0
    %675 = vmatprep.subr.mxu0 0.0
    %676 = vmatpush1.msra.mxu0 0.0
    %677 = vmatprep.subr.mxu0 0.0
    %678 = vmatpush1.msra.mxu0 0.0
    %679 = vmatprep.subr.mxu0 0.0
    %680 = vmatpush1.msra.mxu0 0.0
    %681 = vmatprep.subr.mxu0 0.0
    %682 = vmatpush1.msra.mxu0 0.0
    %683 = vmatprep.subr.mxu0 0.0
    %684 = vmatpush1.msra.mxu0 0.0
    %685 = vmatprep.subr.mxu0 0.0
    %686 = vmatpush1.msra.mxu0 0.0
    %687 = vmatprep.subr.mxu0 0.0
    %688 = vmatpush1.msra.mxu0 0.0
    %689 = vmatprep.subr.mxu0 0.0
    %690 = vmatpush1.msra.mxu0 0.0
    %691 = vmatprep.subr.mxu0 0.0
    %692 = vmatpush1.msra.mxu0 0.0
    %693 = vmatprep.subr.mxu0 0.0
    %694 = vmatpush1.msra.mxu0 0.0
    %695 = vmatprep.subr.mxu0 0.0
    %696 = vmatpush1.msra.mxu0 0.0
    %697 = vmatprep.subr.mxu0 0.0
    %698 = vmatpush1.msra.mxu0 0.0
    %699 = vmatprep.subr.mxu0 0.0
    %700 = vmatpush1.msra.mxu0 0.0
    %701 = vmatprep.subr.mxu0 0.0
    %702 = vmatpush1.msra.mxu0 0.0
    %703 = vmatprep.subr.mxu0 0.0
    %704 = vmatpush1.msra.mxu0 0.0
    %705 = vmatprep.subr.mxu0 0.0
    %706 = vmatpush1.msra.mxu0 0.0
    %707 = vmatprep.subr.mxu0 0.0
    %708 = vmatpush1.msra.mxu0 0.0
    %709 = vmatprep.mubr.f32.mxu0 0.0
    %710 = vmatmul.mubr.f32.gmra.mrb[0].mxu0 %v39
    %v711 = vpop.f32.mrb[0].mxu0
    %v712 = vadd.f32 0.0, %v711
    %v713 = vpop.f32.mrb[0].mxu0
    %714 = vmatprep.mubr.f32.mxu0 0.0
    %715 = vmatmul.mubr.f32.gmra.mrb[0].mxu0 %v42
    %v716 = vpop.f32.mrb[0].mxu0
    %v717 = vadd.f32 0.0, %v716
    %v718 = vpop.f32.mrb[0].mxu0
    %719 = vmatprep.mubr.f32.mxu0 0.0
    %720 = vmatmul.mubr.f32.gmra.mrb[0].mxu0 %v45
    %v721 = vpop.f32.mrb[0].mxu0
    %v722 = vadd.f32 0.0, %v721
    %v723 = vpop.f32.mrb[0].mxu0
    %724 = vmatprep.mubr.f32.mxu0 0.0
    %725 = vmatmul.mubr.f32.gmra.mrb[0].mxu0 %v48
    %v726 = vpop.f32.mrb[0].mxu0
    %v727 = vadd.f32 0.0, %v726
    %v728 = vpop.f32.mrb[0].mxu0
    %729 = vdwg.mxu0
    %v731 = vsel %vm37, %v117, 0
    %v734 = vsel %vm37, %v122, 0
    %v737 = vsel %vm37, %v127, 0
    %v740 = vsel %vm37, %v132, 0
    %v743 = vsel %vm37, %v202, 0
    %v746 = vsel %vm37, %v207, 0
    %v749 = vsel %vm37, %v212, 0
    %v752 = vsel %vm37, %v217, 0
    %v755 = vsel %vm37, %v287, 0
    %v758 = vsel %vm37, %v292, 0
    %v761 = vsel %vm37, %v297, 0
    %v764 = vsel %vm37, %v302, 0
    %v767 = vsel %vm37, %v372, 0
    %v770 = vsel %vm37, %v377, 0
    %v773 = vsel %vm37, %v382, 0
    %v776 = vsel %vm37, %v387, 0
    %v779 = vsel %vm37, %v457, 0
    %v782 = vsel %vm37, %v462, 0
    %v785 = vsel %vm37, %v467, 0
    %v788 = vsel %vm37, %v472, 0
    %v791 = vsel %vm37, %v542, 0
    %v794 = vsel %vm37, %v547, 0
    %v797 = vsel %vm37, %v552, 0
    %v800 = vsel %vm37, %v557, 0
    %v803 = vsel %vm37, %v627, 0
    %v806 = vsel %vm37, %v632, 0
    %v809 = vsel %vm37, %v637, 0
    %v812 = vsel %vm37, %v642, 0
    %v815 = vsel %vm37, %v712, 0
    %v818 = vsel %vm37, %v717, 0
    %v821 = vsel %vm37, %v722, 0
    %v824 = vsel %vm37, %v727, 0
    %826 = vmatprep.subr.mxu0 0.0
    %827 = vmatpush1.msra.mxu0 %v15
    %828 = vmatprep.subr.mxu0 0.0
    %829 = vmatpush1.msra.mxu0 %v16
    %830 = vmatprep.subr.mxu0 0.0
    %831 = vmatpush1.msra.mxu0 0.0
    %832 = vmatprep.subr.mxu0 0.0
    %833 = vmatpush1.msra.mxu0 0.0
    %834 = vmatprep.subr.mxu0 0.0
    %835 = vmatpush1.msra.mxu0 0.0
    %836 = vmatprep.subr.mxu0 0.0
    %837 = vmatpush1.msra.mxu0 0.0
    %838 = vmatprep.subr.mxu0 0.0
    %839 = vmatpush1.msra.mxu0 0.0
    %840 = vmatprep.subr.mxu0 0.0
    %841 = vmatpush1.msra.mxu0 0.0
    %842 = vmatprep.subr.mxu0 0.0
    %843 = vmatpush1.msra.mxu0 0.0
    %844 = vmatprep.subr.mxu0 0.0
    %845 = vmatpush1.msra.mxu0 0.0
    %846 = vmatprep.subr.mxu0 0.0
    %847 = vmatpush1.msra.mxu0 0.0
    %848 = vmatprep.subr.mxu0 0.0
    %849 = vmatpush1.msra.mxu0 0.0
    %850 = vmatprep.subr.mxu0 0.0
    %851 = vmatpush1.msra.mxu0 0.0
    %852 = vmatprep.subr.mxu0 0.0
    %853 = vmatpush1.msra.mxu0 0.0
    %854 = vmatprep.subr.mxu0 0.0
    %855 = vmatpush1.msra.mxu0 0.0
    %856 = vmatprep.subr.mxu0 0.0
    %857 = vmatpush1.msra.mxu0 0.0
    %858 = vmatprep.subr.mxu0 0.0
    %859 = vmatpush1.msra.mxu0 0.0
    %860 = vmatprep.subr.mxu0 0.0
    %861 = vmatpush1.msra.mxu0 0.0
    %862 = vmatprep.subr.mxu0 0.0
    %863 = vmatpush1.msra.mxu0 0.0
    %864 = vmatprep.subr.mxu0 0.0
    %865 = vmatpush1.msra.mxu0 0.0
    %866 = vmatprep.subr.mxu0 0.0
    %867 = vmatpush1.msra.mxu0 0.0
    %868 = vmatprep.subr.mxu0 0.0
    %869 = vmatpush1.msra.mxu0 0.0
    %870 = vmatprep.subr.mxu0 0.0
    %871 = vmatpush1.msra.mxu0 0.0
    %872 = vmatprep.subr.mxu0 0.0
    %873 = vmatpush1.msra.mxu0 0.0
    %874 = vmatprep.subr.mxu0 0.0
    %875 = vmatpush1.msra.mxu0 0.0
    %876 = vmatprep.subr.mxu0 0.0
    %877 = vmatpush1.msra.mxu0 0.0
    %878 = vmatprep.subr.mxu0 0.0
    %879 = vmatpush1.msra.mxu0 0.0
    %880 = vmatprep.subr.mxu0 0.0
    %881 = vmatpush1.msra.mxu0 0.0
    %882 = vmatprep.subr.mxu0 0.0
    %883 = vmatpush1.msra.mxu0 0.0
    %884 = vmatprep.subr.mxu0 0.0
    %885 = vmatpush1.msra.mxu0 0.0
    %886 = vmatprep.subr.mxu0 0.0
    %887 = vmatpush1.msra.mxu0 0.0
    %888 = vmatprep.subr.mxu0 0.0
    %889 = vmatpush1.msra.mxu0 0.0
    %890 = vmatprep.mubr.f32.mxu0 0.0
    %891 = vmatmul.mubr.f32.gmra.mrb[0].mxu0 %v731
    %v892 = vpop.f32.mrb[0].mxu0
    %v893 = vadd.f32 0.0, %v892
    %v894 = vpop.f32.mrb[0].mxu0
    %895 = vmatprep.mubr.f32.mxu0 0.0
    %896 = vmatmul.mubr.f32.gmra.mrb[0].mxu0 %v734
    %v897 = vpop.f32.mrb[0].mxu0
    %v898 = vadd.f32 0.0, %v897
    %v899 = vpop.f32.mrb[0].mxu0
    %900 = vmatprep.mubr.f32.mxu0 0.0
    %901 = vmatmul.mubr.f32.gmra.mrb[0].mxu0 %v737
    %v902 = vpop.f32.mrb[0].mxu0
    %v903 = vadd.f32 0.0, %v902
    %v904 = vpop.f32.mrb[0].mxu0
    %905 = vmatprep.mubr.f32.mxu0 0.0
    %906 = vmatmul.mubr.f32.gmra.mrb[0].mxu0 %v740
    %v907 = vpop.f32.mrb[0].mxu0
    %v908 = vadd.f32 0.0, %v907
    %v909 = vpop.f32.mrb[0].mxu0
    %910 = vmatprep.mubr.f32.mxu0 0.0
    %911 = vmatmul.mubr.f32.gmra.mrb[0].mxu0 %v743
    %v912 = vpop.f32.mrb[0].mxu0
    %v913 = vadd.f32 0.0, %v912
    %v914 = vpop.f32.mrb[0].mxu0
    %915 = vmatprep.mubr.f32.mxu0 0.0
    %916 = vmatmul.mubr.f32.gmra.mrb[0].mxu0 %v746
    %v917 = vpop.f32.mrb[0].mxu0
    %v918 = vadd.f32 0.0, %v917
    %v919 = vpop.f32.mrb[0].mxu0
    %920 = vmatprep.mubr.f32.mxu0 0.0
    %921 = vmatmul.mubr.f32.gmra.mrb[0].mxu0 %v749
    %v922 = vpop.f32.mrb[0].mxu0
    %v923 = vadd.f32 0.0, %v922
    %v924 = vpop.f32.mrb[0].mxu0
    %925 = vmatprep.mubr.f32.mxu0 0.0
    %926 = vmatmul.mubr.f32.gmra.mrb[0].mxu0 %v752
    %v927 = vpop.f32.mrb[0].mxu0
    %v928 = vadd.f32 0.0, %v927
    %v929 = vpop.f32.mrb[0].mxu0
    %930 = vmatprep.mubr.f32.mxu0 0.0
    %931 = vmatmul.mubr.f32.gmra.mrb[0].mxu0 %v755
    %v932 = vpop.f32.mrb[0].mxu0
    %v933 = vadd.f32 0.0, %v932
    %v934 = vpop.f32.mrb[0].mxu0
    %935 = vmatprep.mubr.f32.mxu0 0.0
    %936 = vmatmul.mubr.f32.gmra.mrb[0].mxu0 %v758
    %v937 = vpop.f32.mrb[0].mxu0
    %v938 = vadd.f32 0.0, %v937
    %v939 = vpop.f32.mrb[0].mxu0
    %940 = vmatprep.mubr.f32.mxu0 0.0
    %941 = vmatmul.mubr.f32.gmra.mrb[0].mxu0 %v761
    %v942 = vpop.f32.mrb[0].mxu0
    %v943 = vadd.f32 0.0, %v942
    %v944 = vpop.f32.mrb[0].mxu0
    %945 = vmatprep.mubr.f32.mxu0 0.0
    %946 = vmatmul.mubr.f32.gmra.mrb[0].mxu0 %v764
    %v947 = vpop.f32.mrb[0].mxu0
    %v948 = vadd.f32 0.0, %v947
    %v949 = vpop.f32.mrb[0].mxu0
    %950 = vmatprep.mubr.f32.mxu0 0.0
    %951 = vmatmul.mubr.f32.gmra.mrb[0].mxu0 %v767
    %v952 = vpop.f32.mrb[0].mxu0
    %v953 = vadd.f32 0.0, %v952
    %v954 = vpop.f32.mrb[0].mxu0
    %955 = vmatprep.mubr.f32.mxu0 0.0
    %956 = vmatmul.mubr.f32.gmra.mrb[0].mxu0 %v770
    %v957 = vpop.f32.mrb[0].mxu0
    %v958 = vadd.f32 0.0, %v957
    %v959 = vpop.f32.mrb[0].mxu0
    %960 = vmatprep.mubr.f32.mxu0 0.0
    %961 = vmatmul.mubr.f32.gmra.mrb[0].mxu0 %v773
    %v962 = vpop.f32.mrb[0].mxu0
    %v963 = vadd.f32 0.0, %v962
    %v964 = vpop.f32.mrb[0].mxu0
    %965 = vmatprep.mubr.f32.mxu0 0.0
    %966 = vmatmul.mubr.f32.gmra.mrb[0].mxu0 %v776
    %v967 = vpop.f32.mrb[0].mxu0
    %v968 = vadd.f32 0.0, %v967
    %v969 = vpop.f32.mrb[0].mxu0
    %970 = vmatprep.mubr.f32.mxu0 0.0
    %971 = vmatmul.mubr.f32.gmra.mrb[0].mxu0 %v779
    %v972 = vpop.f32.mrb[0].mxu0
    %v973 = vadd.f32 0.0, %v972
    %v974 = vpop.f32.mrb[0].mxu0
    %975 = vmatprep.mubr.f32.mxu0 0.0
    %976 = vmatmul.mubr.f32.gmra.mrb[0].mxu0 %v782
    %v977 = vpop.f32.mrb[0].mxu0
    %v978 = vadd.f32 0.0, %v977
    %v979 = vpop.f32.mrb[0].mxu0
    %980 = vmatprep.mubr.f32.mxu0 0.0
    %981 = vmatmul.mubr.f32.gmra.mrb[0].mxu0 %v785
    %v982 = vpop.f32.mrb[0].mxu0
    %v983 = vadd.f32 0.0, %v982
    %v984 = vpop.f32.mrb[0].mxu0
    %985 = vmatprep.mubr.f32.mxu0 0.0
    %986 = vmatmul.mubr.f32.gmra.mrb[0].mxu0 %v788
    %v987 = vpop.f32.mrb[0].mxu0
    %v988 = vadd.f32 0.0, %v987
    %v989 = vpop.f32.mrb[0].mxu0
    %990 = vmatprep.mubr.f32.mxu0 0.0
    %991 = vmatmul.mubr.f32.gmra.mrb[0].mxu0 %v791
    %v992 = vpop.f32.mrb[0].mxu0
    %v993 = vadd.f32 0.0, %v992
    %v994 = vpop.f32.mrb[0].mxu0
    %995 = vmatprep.mubr.f32.mxu0 0.0
    %996 = vmatmul.mubr.f32.gmra.mrb[0].mxu0 %v794
    %v997 = vpop.f32.mrb[0].mxu0
    %v998 = vadd.f32 0.0, %v997
    %v999 = vpop.f32.mrb[0].mxu0
    %1000 = vmatprep.mubr.f32.mxu0 0.0
    %1001 = vmatmul.mubr.f32.gmra.mrb[0].mxu0 %v797
    %v1002 = vpop.f32.mrb[0].mxu0
    %v1003 = vadd.f32 0.0, %v1002
    %v1004 = vpop.f32.mrb[0].mxu0
    %1005 = vmatprep.mubr.f32.mxu0 0.0
    %1006 = vmatmul.mubr.f32.gmra.mrb[0].mxu0 %v800
    %v1007 = vpop.f32.mrb[0].mxu0
    %v1008 = vadd.f32 0.0, %v1007
    %v1009 = vpop.f32.mrb[0].mxu0
    %1010 = vmatprep.mubr.f32.mxu0 0.0
    %1011 = vmatmul.mubr.f32.gmra.mrb[0].mxu0 %v803
    %v1012 = vpop.f32.mrb[0].mxu0
    %v1013 = vadd.f32 0.0, %v1012
    %v1014 = vpop.f32.mrb[0].mxu0
    %1015 = vmatprep.mubr.f32.mxu0 0.0
    %1016 = vmatmul.mubr.f32.gmra.mrb[0].mxu0 %v806
    %v1017 = vpop.f32.mrb[0].mxu0
    %v1018 = vadd.f32 0.0, %v1017
    %v1019 = vpop.f32.mrb[0].mxu0
    %1020 = vmatprep.mubr.f32.mxu0 0.0
    %1021 = vmatmul.mubr.f32.gmra.mrb[0].mxu0 %v809
    %v1022 = vpop.f32.mrb[0].mxu0
    %v1023 = vadd.f32 0.0, %v1022
    %v1024 = vpop.f32.mrb[0].mxu0
    %1025 = vmatprep.mubr.f32.mxu0 0.0
    %1026 = vmatmul.mubr.f32.gmra.mrb[0].mxu0 %v812
    %v1027 = vpop.f32.mrb[0].mxu0
    %v1028 = vadd.f32 0.0, %v1027
    %v1029 = vpop.f32.mrb[0].mxu0
    %1030 = vmatprep.mubr.f32.mxu0 0.0
    %1031 = vmatmul.mubr.f32.gmra.mrb[0].mxu0 %v815
    %v1032 = vpop.f32.mrb[0].mxu0
    %v1033 = vadd.f32 0.0, %v1032
    %v1034 = vpop.f32.mrb[0].mxu0
    %1035 = vmatprep.mubr.f32.mxu0 0.0
    %1036 = vmatmul.mubr.f32.gmra.mrb[0].mxu0 %v818
    %v1037 = vpop.f32.mrb[0].mxu0
    %v1038 = vadd.f32 0.0, %v1037
    %v1039 = vpop.f32.mrb[0].mxu0
    %1040 = vmatprep.mubr.f32.mxu0 0.0
    %1041 = vmatmul.mubr.f32.gmra.mrb[0].mxu0 %v821
    %v1042 = vpop.f32.mrb[0].mxu0
    %v1043 = vadd.f32 0.0, %v1042
    %v1044 = vpop.f32.mrb[0].mxu0
    %1045 = vmatprep.mubr.f32.mxu0 0.0
    %1046 = vmatmul.mubr.f32.gmra.mrb[0].mxu0 %v824
    %v1047 = vpop.f32.mrb[0].mxu0
    %v1048 = vadd.f32 0.0, %v1047
    %v1049 = vpop.f32.mrb[0].mxu0
    %1050 = vdwg.mxu0
    %vm1051 = vcmask 261120
    %1052 = vst.msk [vmem:[#allocation2] sm:$0xff] %vm1051, %v893
    %1053 = vst.msk [vmem:[#allocation2 + $0x8] sm:$0xff] %vm1051, %v898
    %1054 = vst.msk [vmem:[#allocation2 + $0x10] sm:$0xff] %vm1051, %v903
    %1055 = vst.msk [vmem:[#allocation2 + $0x18] sm:$0xff] %vm1051, %v908
    %1056 = vst.msk [vmem:[#allocation2 + $0x20] sm:$0xff] %vm1051, %v913
    %1057 = vst.msk [vmem:[#allocation2 + $0x28] sm:$0xff] %vm1051, %v918
    %1058 = vst.msk [vmem:[#allocation2 + $0x30] sm:$0xff] %vm1051, %v923
    %1059 = vst.msk [vmem:[#allocation2 + $0x38] sm:$0xff] %vm1051, %v928
    %1060 = vst.msk [vmem:[#allocation2 + $0x40] sm:$0xff] %vm1051, %v933
    %1061 = vst.msk [vmem:[#allocation2 + $0x48] sm:$0xff] %vm1051, %v938
    %1062 = vst.msk [vmem:[#allocation2 + $0x50] sm:$0xff] %vm1051, %v943
    %1063 = vst.msk [vmem:[#allocation2 + $0x58] sm:$0xff] %vm1051, %v948
    %1064 = vst.msk [vmem:[#allocation2 + $0x60] sm:$0xff] %vm1051, %v953
    %1065 = vst.msk [vmem:[#allocation2 + $0x68] sm:$0xff] %vm1051, %v958
    %1066 = vst.msk [vmem:[#allocation2 + $0x70] sm:$0xff] %vm1051, %v963
    %1067 = vst.msk [vmem:[#allocation2 + $0x78] sm:$0xff] %vm1051, %v968
    %1068 = vst.msk [vmem:[#allocation2 + $0x80] sm:$0xff] %vm1051, %v973
    %1069 = vst.msk [vmem:[#allocation2 + $0x88] sm:$0xff] %vm1051, %v978
    %1070 = vst.msk [vmem:[#allocation2 + $0x90] sm:$0xff] %vm1051, %v983
    %1071 = vst.msk [vmem:[#allocation2 + $0x98] sm:$0xff] %vm1051, %v988
    %1072 = vst.msk [vmem:[#allocation2 + $0xa0] sm:$0xff] %vm1051, %v993
    %1073 = vst.msk [vmem:[#allocation2 + $0xa8] sm:$0xff] %vm1051, %v998
    %1074 = vst.msk [vmem:[#allocation2 + $0xb0] sm:$0xff] %vm1051, %v1003
    %1075 = vst.msk [vmem:[#allocation2 + $0xb8] sm:$0xff] %vm1051, %v1008
    %1076 = vst.msk [vmem:[#allocation2 + $0xc0] sm:$0xff] %vm1051, %v1013
    %1077 = vst.msk [vmem:[#allocation2 + $0xc8] sm:$0xff] %vm1051, %v1018
    %1078 = vst.msk [vmem:[#allocation2 + $0xd0] sm:$0xff] %vm1051, %v1023
    %1079 = vst.msk [vmem:[#allocation2 + $0xd8] sm:$0xff] %vm1051, %v1028
    %1080 = vst.msk [vmem:[#allocation2 + $0xe0] sm:$0xff] %vm1051, %v1033
    %1081 = vst.msk [vmem:[#allocation2 + $0xe8] sm:$0xff] %vm1051, %v1038
    %1082 = vst.msk [vmem:[#allocation2 + $0xf0] sm:$0xff] %vm1051, %v1043
    %1083 = vst.msk [vmem:[#allocation2 + $0xf8] sm:$0xff] %vm1051, %v1048
    // Predicated region
    $region14: #{interpolate.1} parent=1 // pred_check
      _
    $region15: #{interpolate.1} parent=1 // pred_check_branch
      %1085 = sbr.rel (0) target = $region17
    $region16: #{interpolate.1} parent=1 // pred_region
      %s1087 = ssub.s32 4096, 4096
      %1088 = vsyncadd [#allocation3], %s1087
      %s1089 = sshll.u32 [#allocation2], 4
      %s1090 = int_to_ptr.vmem [resolvable:$true] %s1089
      %1095 = dma.vmem_to_hbm [thread:$0]  %s1090, 4096, %s3, [#allocation3], 128, 128, 8
    $region17: #{interpolate.1} parent=1 // pred_fallthru
      _
    // Predicated region
    $region18: #{interpolate.1} parent=1 // pred_check
      _
    $region19: #{interpolate.1} parent=1 // pred_check_branch
      %1097 = sbr.rel (0) target = $region21
    $region20: #{interpolate.1} parent=1 // pred_region
      %1098 = dma.done [#allocation3], 4096
    $region21: #{interpolate.1} parent=1 // pred_fallthru
      _
    %1099 = vsyncpa [#allocation3], 1

</llo_original>
